<compile_context>
chip_gen: v5e
topology: v5e:2x2
jax: 0.10.0
libtpu: 0.0.40
codegen_flags: <defaults>
</compile_context>

<pallas_src>
import functools

import jax
import jax.numpy as jnp
from jax.experimental import pallas as pl
from jax.experimental.pallas import tpu as pltpu

_C1 = 0.01 ** 2
_C2 = 0.03 ** 2


def _ssim_kernel(h, w, x_ref, y_ref, o_ref):
    """One tile: a (rows, lanes) slab holding (rows//h)*(lanes//w) images.

    Images are stacked along sublanes in blocks of h rows and packed along
    lanes in blocks of w columns.  All images are independent; the 3x3
    zero-padded box filter never crosses an image boundary thanks to the
    row/col masks (built once, reused by all five filtered maps).
    """
    x = x_ref[...].astype(jnp.float32)
    y = y_ref[...].astype(jnp.float32)
    rows, lanes = x.shape

    ri = jax.lax.broadcasted_iota(jnp.int32, (rows, lanes), 0)
    ci = jax.lax.broadcasted_iota(jnp.int32, (rows, lanes), 1)
    rm = ri if rows == h else ri % h      # per-image row index
    cm = ci if lanes == w else ci % w     # per-image col index
    top = rm == 0
    bot = rm == h - 1
    lft = cm == 0
    rgt = cm == w - 1

    def box9(a):
        # Separable 3x3 box average with zero padding, fixed divisor 9.
        # Positive rotate amounts only; wrapped elements are masked to zero,
        # so roll(n-1) is exactly the "j+1" neighbour here.
        right = jnp.where(rgt, 0.0, pltpu.roll(a, lanes - 1, axis=1))  # a[:, j+1]
        left = jnp.where(lft, 0.0, pltpu.roll(a, 1, axis=1))           # a[:, j-1]
        s = a + left + right
        below = jnp.where(bot, 0.0, pltpu.roll(s, rows - 1, axis=0))   # s[i+1, :]
        above = jnp.where(top, 0.0, pltpu.roll(s, 1, axis=0))          # s[i-1, :]
        return (s + above + below) * (1.0 / 9.0)

    mu_x = box9(x)
    mu_y = box9(y)
    mu_x2 = mu_x * mu_x
    mu_y2 = mu_y * mu_y
    mu_xy = mu_x * mu_y

    sigma_xy = box9(x * y) - mu_xy
    num = (2.0 * mu_xy + _C1) * (2.0 * sigma_xy + _C2)
    sigma_sum = (box9(x * x) - mu_x2) + (box9(y * y) - mu_y2)
    den = (mu_x2 + mu_y2 + _C1) * (sigma_sum + _C2)
    ssim = num * pl.reciprocal(den, approx=False)   # EUP slot, off the VALU

    # Per-lane partial sums; the wrapper does the final reduce + mean.
    o_ref[0] = jnp.sum(ssim, axis=0, keepdims=True)


def ssim_loss(x, y):
    """x, y: (B, C, H, W). Returns scalar SSIM loss (float32)."""
    assert x.shape == y.shape and x.ndim == 4
    b, c, h, w = x.shape
    bc = b * c

    # ---- lane packing: put P images side-by-side along the lane axis -------
    if w < 128:
        p = 1
        for cand in range(min(max(1, 256 // w), bc), 0, -1):
            if bc % cand == 0:
                p = cand
                break
    else:
        p = 1
    g = bc // p            # remaining (grid-tileable) image-group axis
    lanes = p * w

    xr = x.reshape(bc, h, w)
    yr = y.reshape(bc, h, w)
    if p > 1:
        # (g, p, h, w) -> (g, h, p, w) -> (g*h, p*w): XLA-side layout shuffle.
        xp = xr.reshape(g, p, h, w).transpose(0, 2, 1, 3).reshape(g * h, lanes)
        yp = yr.reshape(g, p, h, w).transpose(0, 2, 1, 3).reshape(g * h, lanes)
    else:
        xp = xr.reshape(g * h, lanes)   # contiguous: free reshape
        yp = yr.reshape(g * h, lanes)

    # ---- choose groups-per-tile (tg) ----------------------------------------
    in_item = jnp.dtype(x.dtype).itemsize
    # 2 inputs x 2 pipeline buffers (native dtype) + ~13 live f32 slabs
    # (x, y, mu_x, mu_y, masks, num/den accumulators, box() temps, ssim).
    def tile_bytes(tg):
        return tg * h * lanes * (4 * in_item + 13 * 4)

    budget = 24 * 1024 * 1024
    feas = [t for t in range(1, g + 1)
            if g % t == 0 and ((t * h) % 8 == 0 or t == g)]
    fits = [t for t in feas if tile_bytes(t) <= budget]
    if fits:
        # Prefer an even tile count (keeps both v7x TensorCores busy), then the
        # largest tile that fits (amortizes ~0.35us per-grid-step overhead).
        even = [t for t in fits if (g // t) % 2 == 0]
        tg = max(even) if even else max(fits)
    else:
        tg = min(feas)     # smallest legal tile (huge images); may spill
    num_tiles = g // tg
    rows = tg * h

    partial = pl.pallas_call(
        functools.partial(_ssim_kernel, h, w),
        out_shape=jax.ShapeDtypeStruct((num_tiles, 1, lanes), jnp.float32),
        grid=(num_tiles,),
        in_specs=[
            pl.BlockSpec((rows, lanes), lambda i: (i, 0)),
            pl.BlockSpec((rows, lanes), lambda i: (i, 0)),
        ],
        out_specs=pl.BlockSpec((1, 1, lanes), lambda i: (i, 0, 0)),
        compiler_params=pltpu.CompilerParams(
            dimension_semantics=("parallel",),
            vmem_limit_bytes=48 * 1024 * 1024,
        ),
    )(xp, yp)

    total = jnp.sum(partial, dtype=jnp.float32)
    return 1.0 - total / jnp.float32(bc * h * w)


# ---------------------------------------------------------------------------
# Pure-JAX reference (concatenate-based zero padding) for validation.
# ---------------------------------------------------------------------------
def _box_avg3x3_ref(a):
    bc, h, w = a.shape
    zr = jnp.zeros((bc, 1, w), a.dtype)
    ap = jnp.concatenate([zr, a, zr], axis=1)
    zc = jnp.zeros((bc, h + 2, 1), a.dtype)
    ap = jnp.concatenate([zc, ap, zc], axis=2)
    s = jnp.zeros((bc, h, w), a.dtype)
    for di in range(3):
        for dj in range(3):
            s = s + ap[:, di:di + h, dj:dj + w]
    return s * (1.0 / 9.0)


def _ssim_loss_ref(x, y):
    b, c, h, w = x.shape
    xf = x.reshape(b * c, h, w).astype(jnp.float32)
    yf = y.reshape(b * c, h, w).astype(jnp.float32)
    mu_x = _box_avg3x3_ref(xf)
    mu_y = _box_avg3x3_ref(yf)
    sigma_x = _box_avg3x3_ref(xf * xf) - mu_x ** 2
    sigma_y = _box_avg3x3_ref(yf * yf) - mu_y ** 2
    sigma_xy = _box_avg3x3_ref(xf * yf) - mu_x * mu_y
    ssim = (2 * mu_x * mu_y + _C1) * (2 * sigma_xy + _C2) / (
        (mu_x ** 2 + mu_y ** 2 + _C1) * (sigma_x + sigma_y + _C2))
    return 1.0 - jnp.mean(ssim)


if __name__ == "__main__":
    key = jax.random.PRNGKey(0)
    kx, ky = jax.random.split(key)
    B, C, H, W = 2, 4, 16, 16
    x = jax.random.uniform(kx, (B, C, H, W), dtype=jnp.float32)
    y = jax.random.uniform(ky, (B, C, H, W), dtype=jnp.float32)

    loss = ssim_loss(x, y)
    jax.block_until_ready(loss)

    ref = _ssim_loss_ref(x, y)
    assert jnp.allclose(loss, ref, atol=1e-4, rtol=1e-4), (loss, ref)

    print("KERNEL_OK")
</pallas_src>

<mosaic_0001>
module attributes {stable_mosaic.version = 11 : i64} {
  func.func @_ssim_kernel(%arg0: i32, %arg1: memref<16x128xf32, #tpu.memory_space<vmem>>, %arg2: memref<16x128xf32, #tpu.memory_space<vmem>>, %arg3: memref<1x1x128xf32, #tpu.memory_space<vmem>>) attributes {dimension_semantics = [#tpu.dimension_semantics<parallel>], iteration_bounds = array<i64: 1>, scalar_prefetch = 0 : i64, scratch_operands = 0 : i64, tpu.core_type = #tpu.core_type<tc>, window_params = [{transform_indices = @transform_0, window_bounds = array<i64: 16, 128>}, {transform_indices = @transform_1, window_bounds = array<i64: 16, 128>}, {transform_indices = @transform_2, window_bounds = array<i64: 1, 1, 128>}]} {
    %c0 = arith.constant 0 : index
    %c0_0 = arith.constant 0 : index
    %0 = vector.load %arg1[%c0, %c0_0] : memref<16x128xf32, #tpu.memory_space<vmem>>, vector<16x128xf32>
    %c0_1 = arith.constant 0 : index
    %c0_2 = arith.constant 0 : index
    %1 = vector.load %arg2[%c0_1, %c0_2] : memref<16x128xf32, #tpu.memory_space<vmem>>, vector<16x128xf32>
    %2 = tpu.iota {dimensions = array<i32: 0>} : vector<16x128xi32>
    %3 = tpu.iota {dimensions = array<i32: 1>} : vector<16x128xi32>
    %c16_i32 = arith.constant 16 : i32
    %c0_i32 = arith.constant 0 : i32
    %4 = arith.cmpi eq, %c16_i32, %c0_i32 : i32
    %c1_i32 = arith.constant 1 : i32
    %5 = arith.select %4, %c1_i32, %c16_i32 : i32
    %6 = vector.broadcast %5 : i32 to vector<16x128xi32>
    %7 = arith.remsi %3, %6 : vector<16x128xi32>
    %c0_i32_3 = arith.constant 0 : i32
    %8 = vector.broadcast %c0_i32_3 : i32 to vector<16x128xi32>
    %9 = arith.cmpi ne, %7, %8 : vector<16x128xi32>
    %c0_i32_4 = arith.constant 0 : i32
    %10 = vector.broadcast %c0_i32_4 : i32 to vector<16x128xi32>
    %11 = arith.cmpi slt, %7, %10 : vector<16x128xi32>
    %c0_i32_5 = arith.constant 0 : i32
    %12 = arith.cmpi slt, %5, %c0_i32_5 : i32
    %13 = vector.broadcast %12 : i1 to vector<16x128xi1>
    %14 = vector.broadcast %13 : vector<16x128xi1> to vector<16x128xi1>
    %15 = arith.xori %11, %14 : vector<16x128xi1>
    %16 = arith.andi %15, %9 : vector<16x128xi1>
    %17 = vector.broadcast %5 : i32 to vector<16x128xi32>
    %18 = arith.addi %7, %17 : vector<16x128xi32>
    %19 = arith.select %16, %18, %7 : vector<16x128xi1>, vector<16x128xi32>
    %c0_i32_6 = arith.constant 0 : i32
    %20 = vector.broadcast %c0_i32_6 : i32 to vector<16x128xi32>
    %21 = arith.cmpi eq, %2, %20 : vector<16x128xi32>
    %c15_i32 = arith.constant 15 : i32
    %22 = vector.broadcast %c15_i32 : i32 to vector<16x128xi32>
    %23 = arith.cmpi eq, %2, %22 : vector<16x128xi32>
    %c0_i32_7 = arith.constant 0 : i32
    %24 = vector.broadcast %c0_i32_7 : i32 to vector<16x128xi32>
    %25 = arith.cmpi eq, %19, %24 : vector<16x128xi32>
    %c15_i32_8 = arith.constant 15 : i32
    %26 = vector.broadcast %c15_i32_8 : i32 to vector<16x128xi32>
    %27 = arith.cmpi eq, %19, %26 : vector<16x128xi32>
    %c127_i32 = arith.constant 127 : i32
    %28 = tpu.dynamic_rotate %0 by %c127_i32 dim 1 : vector<16x128xf32>, i32 -> vector<16x128xf32>
    %cst = arith.constant 0.000000e+00 : f32
    %29 = vector.broadcast %cst : f32 to vector<16x128xf32>
    %30 = arith.select %27, %29, %28 : vector<16x128xi1>, vector<16x128xf32>
    %c1_i32_9 = arith.constant 1 : i32
    %31 = tpu.dynamic_rotate %0 by %c1_i32_9 dim 1 : vector<16x128xf32>, i32 -> vector<16x128xf32>
    %cst_10 = arith.constant 0.000000e+00 : f32
    %32 = vector.broadcast %cst_10 : f32 to vector<16x128xf32>
    %33 = arith.select %25, %32, %31 : vector<16x128xi1>, vector<16x128xf32>
    %34 = arith.addf %0, %33 : vector<16x128xf32>
    %35 = arith.addf %34, %30 : vector<16x128xf32>
    %c15_i32_11 = arith.constant 15 : i32
    %36 = tpu.dynamic_rotate %35 by %c15_i32_11 dim 0 : vector<16x128xf32>, i32 -> vector<16x128xf32>
    %cst_12 = arith.constant 0.000000e+00 : f32
    %37 = vector.broadcast %cst_12 : f32 to vector<16x128xf32>
    %38 = arith.select %23, %37, %36 : vector<16x128xi1>, vector<16x128xf32>
    %c1_i32_13 = arith.constant 1 : i32
    %39 = tpu.dynamic_rotate %35 by %c1_i32_13 dim 0 : vector<16x128xf32>, i32 -> vector<16x128xf32>
    %cst_14 = arith.constant 0.000000e+00 : f32
    %40 = vector.broadcast %cst_14 : f32 to vector<16x128xf32>
    %41 = arith.select %21, %40, %39 : vector<16x128xi1>, vector<16x128xf32>
    %42 = arith.addf %35, %41 : vector<16x128xf32>
    %43 = arith.addf %42, %38 : vector<16x128xf32>
    %cst_15 = arith.constant 0.111111112 : f32
    %44 = vector.broadcast %cst_15 : f32 to vector<16x128xf32>
    %45 = arith.mulf %43, %44 : vector<16x128xf32>
    %c127_i32_16 = arith.constant 127 : i32
    %46 = tpu.dynamic_rotate %1 by %c127_i32_16 dim 1 : vector<16x128xf32>, i32 -> vector<16x128xf32>
    %cst_17 = arith.constant 0.000000e+00 : f32
    %47 = vector.broadcast %cst_17 : f32 to vector<16x128xf32>
    %48 = arith.select %27, %47, %46 : vector<16x128xi1>, vector<16x128xf32>
    %c1_i32_18 = arith.constant 1 : i32
    %49 = tpu.dynamic_rotate %1 by %c1_i32_18 dim 1 : vector<16x128xf32>, i32 -> vector<16x128xf32>
    %cst_19 = arith.constant 0.000000e+00 : f32
    %50 = vector.broadcast %cst_19 : f32 to vector<16x128xf32>
    %51 = arith.select %25, %50, %49 : vector<16x128xi1>, vector<16x128xf32>
    %52 = arith.addf %1, %51 : vector<16x128xf32>
    %53 = arith.addf %52, %48 : vector<16x128xf32>
    %c15_i32_20 = arith.constant 15 : i32
    %54 = tpu.dynamic_rotate %53 by %c15_i32_20 dim 0 : vector<16x128xf32>, i32 -> vector<16x128xf32>
    %cst_21 = arith.constant 0.000000e+00 : f32
    %55 = vector.broadcast %cst_21 : f32 to vector<16x128xf32>
    %56 = arith.select %23, %55, %54 : vector<16x128xi1>, vector<16x128xf32>
    %c1_i32_22 = arith.constant 1 : i32
    %57 = tpu.dynamic_rotate %53 by %c1_i32_22 dim 0 : vector<16x128xf32>, i32 -> vector<16x128xf32>
    %cst_23 = arith.constant 0.000000e+00 : f32
    %58 = vector.broadcast %cst_23 : f32 to vector<16x128xf32>
    %59 = arith.select %21, %58, %57 : vector<16x128xi1>, vector<16x128xf32>
    %60 = arith.addf %53, %59 : vector<16x128xf32>
    %61 = arith.addf %60, %56 : vector<16x128xf32>
    %cst_24 = arith.constant 0.111111112 : f32
    %62 = vector.broadcast %cst_24 : f32 to vector<16x128xf32>
    %63 = arith.mulf %61, %62 : vector<16x128xf32>
    %64 = arith.mulf %45, %45 : vector<16x128xf32>
    %65 = arith.mulf %63, %63 : vector<16x128xf32>
    %66 = arith.mulf %45, %63 : vector<16x128xf32>
    %67 = arith.mulf %0, %1 : vector<16x128xf32>
    %c127_i32_25 = arith.constant 127 : i32
    %68 = tpu.dynamic_rotate %67 by %c127_i32_25 dim 1 : vector<16x128xf32>, i32 -> vector<16x128xf32>
    %cst_26 = arith.constant 0.000000e+00 : f32
    %69 = vector.broadcast %cst_26 : f32 to vector<16x128xf32>
    %70 = arith.select %27, %69, %68 : vector<16x128xi1>, vector<16x128xf32>
    %c1_i32_27 = arith.constant 1 : i32
    %71 = tpu.dynamic_rotate %67 by %c1_i32_27 dim 1 : vector<16x128xf32>, i32 -> vector<16x128xf32>
    %cst_28 = arith.constant 0.000000e+00 : f32
    %72 = vector.broadcast %cst_28 : f32 to vector<16x128xf32>
    %73 = arith.select %25, %72, %71 : vector<16x128xi1>, vector<16x128xf32>
    %74 = arith.addf %67, %73 : vector<16x128xf32>
    %75 = arith.addf %74, %70 : vector<16x128xf32>
    %c15_i32_29 = arith.constant 15 : i32
    %76 = tpu.dynamic_rotate %75 by %c15_i32_29 dim 0 : vector<16x128xf32>, i32 -> vector<16x128xf32>
    %cst_30 = arith.constant 0.000000e+00 : f32
    %77 = vector.broadcast %cst_30 : f32 to vector<16x128xf32>
    %78 = arith.select %23, %77, %76 : vector<16x128xi1>, vector<16x128xf32>
    %c1_i32_31 = arith.constant 1 : i32
    %79 = tpu.dynamic_rotate %75 by %c1_i32_31 dim 0 : vector<16x128xf32>, i32 -> vector<16x128xf32>
    %cst_32 = arith.constant 0.000000e+00 : f32
    %80 = vector.broadcast %cst_32 : f32 to vector<16x128xf32>
    %81 = arith.select %21, %80, %79 : vector<16x128xi1>, vector<16x128xf32>
    %82 = arith.addf %75, %81 : vector<16x128xf32>
    %83 = arith.addf %82, %78 : vector<16x128xf32>
    %cst_33 = arith.constant 0.111111112 : f32
    %84 = vector.broadcast %cst_33 : f32 to vector<16x128xf32>
    %85 = arith.mulf %83, %84 : vector<16x128xf32>
    %86 = arith.subf %85, %66 : vector<16x128xf32>
    %cst_34 = arith.constant 2.000000e+00 : f32
    %87 = vector.broadcast %cst_34 : f32 to vector<16x128xf32>
    %88 = arith.mulf %87, %66 : vector<16x128xf32>
    %cst_35 = arith.constant 9.99999974E-5 : f32
    %89 = vector.broadcast %cst_35 : f32 to vector<16x128xf32>
    %90 = arith.addf %88, %89 : vector<16x128xf32>
    %cst_36 = arith.constant 2.000000e+00 : f32
    %91 = vector.broadcast %cst_36 : f32 to vector<16x128xf32>
    %92 = arith.mulf %91, %86 : vector<16x128xf32>
    %cst_37 = arith.constant 8.99999984E-4 : f32
    %93 = vector.broadcast %cst_37 : f32 to vector<16x128xf32>
    %94 = arith.addf %92, %93 : vector<16x128xf32>
    %95 = arith.mulf %90, %94 : vector<16x128xf32>
    %96 = arith.mulf %0, %0 : vector<16x128xf32>
    %c127_i32_38 = arith.constant 127 : i32
    %97 = tpu.dynamic_rotate %96 by %c127_i32_38 dim 1 : vector<16x128xf32>, i32 -> vector<16x128xf32>
    %cst_39 = arith.constant 0.000000e+00 : f32
    %98 = vector.broadcast %cst_39 : f32 to vector<16x128xf32>
    %99 = arith.select %27, %98, %97 : vector<16x128xi1>, vector<16x128xf32>
    %c1_i32_40 = arith.constant 1 : i32
    %100 = tpu.dynamic_rotate %96 by %c1_i32_40 dim 1 : vector<16x128xf32>, i32 -> vector<16x128xf32>
    %cst_41 = arith.constant 0.000000e+00 : f32
    %101 = vector.broadcast %cst_41 : f32 to vector<16x128xf32>
    %102 = arith.select %25, %101, %100 : vector<16x128xi1>, vector<16x128xf32>
    %103 = arith.addf %96, %102 : vector<16x128xf32>
    %104 = arith.addf %103, %99 : vector<16x128xf32>
    %c15_i32_42 = arith.constant 15 : i32
    %105 = tpu.dynamic_rotate %104 by %c15_i32_42 dim 0 : vector<16x128xf32>, i32 -> vector<16x128xf32>
    %cst_43 = arith.constant 0.000000e+00 : f32
    %106 = vector.broadcast %cst_43 : f32 to vector<16x128xf32>
    %107 = arith.select %23, %106, %105 : vector<16x128xi1>, vector<16x128xf32>
    %c1_i32_44 = arith.constant 1 : i32
    %108 = tpu.dynamic_rotate %104 by %c1_i32_44 dim 0 : vector<16x128xf32>, i32 -> vector<16x128xf32>
    %cst_45 = arith.constant 0.000000e+00 : f32
    %109 = vector.broadcast %cst_45 : f32 to vector<16x128xf32>
    %110 = arith.select %21, %109, %108 : vector<16x128xi1>, vector<16x128xf32>
    %111 = arith.addf %104, %110 : vector<16x128xf32>
    %112 = arith.addf %111, %107 : vector<16x128xf32>
    %cst_46 = arith.constant 0.111111112 : f32
    %113 = vector.broadcast %cst_46 : f32 to vector<16x128xf32>
    %114 = arith.mulf %112, %113 : vector<16x128xf32>
    %115 = arith.subf %114, %64 : vector<16x128xf32>
    %116 = arith.mulf %1, %1 : vector<16x128xf32>
    %c127_i32_47 = arith.constant 127 : i32
    %117 = tpu.dynamic_rotate %116 by %c127_i32_47 dim 1 : vector<16x128xf32>, i32 -> vector<16x128xf32>
    %cst_48 = arith.constant 0.000000e+00 : f32
    %118 = vector.broadcast %cst_48 : f32 to vector<16x128xf32>
    %119 = arith.select %27, %118, %117 : vector<16x128xi1>, vector<16x128xf32>
    %c1_i32_49 = arith.constant 1 : i32
    %120 = tpu.dynamic_rotate %116 by %c1_i32_49 dim 1 : vector<16x128xf32>, i32 -> vector<16x128xf32>
    %cst_50 = arith.constant 0.000000e+00 : f32
    %121 = vector.broadcast %cst_50 : f32 to vector<16x128xf32>
    %122 = arith.select %25, %121, %120 : vector<16x128xi1>, vector<16x128xf32>
    %123 = arith.addf %116, %122 : vector<16x128xf32>
    %124 = arith.addf %123, %119 : vector<16x128xf32>
    %c15_i32_51 = arith.constant 15 : i32
    %125 = tpu.dynamic_rotate %124 by %c15_i32_51 dim 0 : vector<16x128xf32>, i32 -> vector<16x128xf32>
    %cst_52 = arith.constant 0.000000e+00 : f32
    %126 = vector.broadcast %cst_52 : f32 to vector<16x128xf32>
    %127 = arith.select %23, %126, %125 : vector<16x128xi1>, vector<16x128xf32>
    %c1_i32_53 = arith.constant 1 : i32
    %128 = tpu.dynamic_rotate %124 by %c1_i32_53 dim 0 : vector<16x128xf32>, i32 -> vector<16x128xf32>
    %cst_54 = arith.constant 0.000000e+00 : f32
    %129 = vector.broadcast %cst_54 : f32 to vector<16x128xf32>
    %130 = arith.select %21, %129, %128 : vector<16x128xi1>, vector<16x128xf32>
    %131 = arith.addf %124, %130 : vector<16x128xf32>
    %132 = arith.addf %131, %127 : vector<16x128xf32>
    %cst_55 = arith.constant 0.111111112 : f32
    %133 = vector.broadcast %cst_55 : f32 to vector<16x128xf32>
    %134 = arith.mulf %132, %133 : vector<16x128xf32>
    %135 = arith.subf %134, %65 : vector<16x128xf32>
    %136 = arith.addf %115, %135 : vector<16x128xf32>
    %137 = arith.addf %64, %65 : vector<16x128xf32>
    %cst_56 = arith.constant 9.99999974E-5 : f32
    %138 = vector.broadcast %cst_56 : f32 to vector<16x128xf32>
    %139 = arith.addf %137, %138 : vector<16x128xf32>
    %cst_57 = arith.constant 8.99999984E-4 : f32
    %140 = vector.broadcast %cst_57 : f32 to vector<16x128xf32>
    %141 = arith.addf %136, %140 : vector<16x128xf32>
    %142 = arith.mulf %139, %141 : vector<16x128xf32>
    %143 = tpu.reciprocal %142 : vector<16x128xf32> -> vector<16x128xf32>
    %144 = arith.mulf %95, %143 : vector<16x128xf32>
    %cst_58 = arith.constant dense<0.000000e+00> : vector<128xf32>
    %145 = vector.multi_reduction <add>, %144, %cst_58 [0] : vector<16x128xf32> to vector<128xf32>
    %146 = vector.shape_cast %145 : vector<128xf32> to vector<1x128xf32>
    %c0_59 = arith.constant 0 : index
    %c0_60 = arith.constant 0 : index
    %c0_61 = arith.constant 0 : index
    %147 = vector.load %arg3[%c0_59, %c0_60, %c0_61] : memref<1x1x128xf32, #tpu.memory_space<vmem>>, vector<1x1x128xf32>
    %148 = vector.shape_cast %147 : vector<1x1x128xf32> to vector<1x128xf32>
    %149 = vector.shape_cast %146 : vector<1x128xf32> to vector<1x1x128xf32>
    tpu.vector_store %arg3[%c0_59, %c0_60, %c0_61], %149 {strides = array<i32>} : memref<1x1x128xf32, #tpu.memory_space<vmem>>, vector<1x1x128xf32>,
    return
  }
  func.func @transform_0(%arg0: i32) -> (i32, i32) {
    %c0_i32 = arith.constant 0 : i32
    %c0_i32_0 = arith.constant 0 : i32
    return %arg0, %c0_i32 : i32, i32
  }
  func.func @transform_1(%arg0: i32) -> (i32, i32) {
    %c0_i32 = arith.constant 0 : i32
    %c0_i32_0 = arith.constant 0 : i32
    return %arg0, %c0_i32 : i32, i32
  }
  func.func @transform_2(%arg0: i32) -> (i32, i32, i32) {
    %c0_i32 = arith.constant 0 : i32
    %c0_i32_0 = arith.constant 0 : i32
    %c0_i32_1 = arith.constant 0 : i32
    return %arg0, %c0_i32, %c0_i32_0 : i32, i32, i32
  }
}

</mosaic_0001>

<llo_original>
// kernel: tpu_custom_call.1
$region0: #{tpu_custom_call.1}
  #allocation0 [shape = 'u32[]', space=smem, size = 0x4, offset = 0x4, fixed_abs, tag = 'smem constant byte address 0x4 - core index']
  #allocation1 [shape = 'u32[72,128]{1,0:T(1,128)}', space=vmem, size = 0x9000, scoped, tag = 'internal scratch']
  %s0 = inlined_call_operand.hbm [shape: f32[16,128], index: 0, kind: input, shape index: {}]
  %s1 = inlined_call_operand.hbm [shape: f32[16,128], index: 1, kind: input, shape index: {}]
  %s2 = inlined_call_operand.hbm [shape: f32[1,1,128], index: 2, kind: output, shape index: {}]
  %s3 = sld [smem:[#allocation0]]
  $region26: #{tpu_custom_call.1} parent=0
    _
  %s5 = ssub.s32 1, %s3
  %s6 = scalar_select 0, %s5, %s3
  $region1: #{tpu_custom_call.1} parent=0
    #allocation2 [shape = 'u8[8192]{0}', space=vmem, size = 0x2000, scoped, tag = 'input window, operand 0, single buffered']
    #allocation3 [shape = 's32[1]{0}', space=sflag, size = 0x4, scoped, tag = 'scoped memory for tpu_custom_call.1']
    #allocation4 [shape = 's32[1]{0}', space=sflag, size = 0x4, scoped, tag = 'scoped memory for tpu_custom_call.1']
    #allocation5 [shape = 'u8[8192]{0}', space=vmem, size = 0x2000, scoped, tag = 'input window, operand 1, single buffered']
    #allocation6 [shape = 's32[1]{0}', space=sflag, size = 0x4, scoped, tag = 'scoped memory for tpu_custom_call.1']
    #allocation7 [shape = 'u8[512]{0}', space=vmem, size = 0x400, scoped, tag = 'output window, operand 0, single buffered']
    %7 = vsyncpa [#allocation3], 0
    %8 = vsyncpa [#allocation6], 0
    %9 = vsyncpa [#allocation4], 0
    // Predicated region
    $region2: #{tpu_custom_call.1} parent=1 // pred_check
      _
    $region3: #{tpu_custom_call.1} parent=1 // pred_check_branch
      %11 = sbr.rel (0) target = $region5
    $region4: #{tpu_custom_call.1} parent=1 // pred_region
      %13 = vsyncadd [#allocation3], 0
      %s14 = sshll.u32 %s0, 4
      %s15 = int_to_ptr.hbm [resolvable:$true] %s14
      %s16 = sshll.u32 [#allocation2], 4
      %s17 = int_to_ptr.vmem [resolvable:$true] %s16
      %22 = dma.hbm_to_vmem [thread:$0]  %s15, 256, %s17, [#allocation3], 128, 128, 8
    $region5: #{tpu_custom_call.1} parent=1 // pred_fallthru
      _
    // Predicated region
    $region6: #{tpu_custom_call.1} parent=1 // pred_check
      _
    $region7: #{tpu_custom_call.1} parent=1 // pred_check_branch
      %24 = sbr.rel (0) target = $region9
    $region8: #{tpu_custom_call.1} parent=1 // pred_region
      %26 = vsyncadd [#allocation6], 0
      %s27 = sshll.u32 %s1, 4
      %s28 = int_to_ptr.hbm [resolvable:$true] %s27
      %s29 = sshll.u32 [#allocation5], 4
      %s30 = int_to_ptr.vmem [resolvable:$true] %s29
      %35 = dma.hbm_to_vmem [thread:$0]  %s28, 256, %s30, [#allocation6], 128, 128, 8
    $region9: #{tpu_custom_call.1} parent=1 // pred_fallthru
      _
    // Predicated region
    $region10: #{tpu_custom_call.1} parent=1 // pred_check
      _
    $region11: #{tpu_custom_call.1} parent=1 // pred_check_branch
      %37 = sbr.rel (0) target = $region13
    $region12: #{tpu_custom_call.1} parent=1 // pred_region
      %39 = dma.done [#allocation3], 256
    $region13: #{tpu_custom_call.1} parent=1 // pred_fallthru
      _
    // Predicated region
    $region14: #{tpu_custom_call.1} parent=1 // pred_check
      _
    $region15: #{tpu_custom_call.1} parent=1 // pred_check_branch
      %41 = sbr.rel (0) target = $region17
    $region16: #{tpu_custom_call.1} parent=1 // pred_region
      %43 = dma.done [#allocation6], 256
    $region17: #{tpu_custom_call.1} parent=1 // pred_fallthru
      _
    %v44 = vld [vmem:[#allocation2] sm:$0xff]
    %v45 = vld [vmem:[#allocation2 + $0x8] sm:$0xff]
    %v46 = vld [vmem:[#allocation5] sm:$0xff]
    %v47 = vld [vmem:[#allocation5 + $0x8] sm:$0xff]
    %v48 = vlaneseq
    %v49 = vshrl.u32 %v48, 7
    %v50 = vadd.s32 %v49, 8
    %v51 = vlaneseq
    %v52 = vand.u32 %v51, 127
    %vm53 = vcmp.lt.s32.totalorder %v52, 0
    %v54 = vsub.s32 0, %v52
    %v55 = vsel %vm53, %v54, %v52
    %v56 = vshrl.u32 %v55, 4
    %v57 = vand.u32 %v55, 15
    %v58 = vsub.s32 0, %v57
    %v59 = vsel %vm53, %v58, %v57
    %vm60 = vcmp.ne.s32.totalorder %v59, 0
    %vm61 = vcmp.lt.s32.totalorder %v59, 0
    %vm62 = vmand %vm61, %vm60
    %v63 = vadd.s32 %v59, 16
    %v64 = vsel %vm62, %v63, %v59
    %vm65 = vcmp.eq.s32.totalorder %v49, 0
    %vm66 = vcmp.eq.s32.totalorder %v50, 0
    %vm67 = vcmp.eq.s32.totalorder %v49, 15
    %vm68 = vcmp.eq.s32.totalorder %v50, 15
    %vm69 = vcmp.eq.s32.totalorder %v64, 0
    %vm70 = vcmp.eq.s32.totalorder %v64, 15
    %71 = vrot.lane.b32.xlu0 %v44, 127
    %v72 = vpop.permute.xlu0 %71
    %73 = vrot.lane.b32.xlu0 %v45, 127
    %v74 = vpop.permute.xlu0 %73
    %v75 = vsel %vm70, 0.0, %v72
    %v76 = vsel %vm70, 0.0, %v74
    %77 = vrot.lane.b32.xlu0 %v44, 1
    %v78 = vpop.permute.xlu0 %77
    %79 = vrot.lane.b32.xlu0 %v45, 1
    %v80 = vpop.permute.xlu0 %79
    %v81 = vsel %vm69, 0.0, %v78
    %v82 = vsel %vm69, 0.0, %v80
    %v83 = vadd.f32 %v44, %v81
    %v84 = vadd.f32 %v45, %v82
    %v85 = vadd.f32 %v83, %v75
    %v86 = vadd.f32 %v84, %v76
    %v87 = vrot.slane %v85, 1
    %v88 = vrot.slane %v86, 1
    %vm89 = vcmp.lt.s32.totalorder %v49, 7
    %v90 = vsel %vm89, %v87, %v88
    %v91 = vsel %vm89, %v88, %v87
    %v92 = vsel %vm67, 0.0, %v90
    %v93 = vsel %vm68, 0.0, %v91
    %v94 = vrot.slane %v85, 7
    %v95 = vrot.slane %v86, 7
    %vm96 = vcmp.lt.s32.totalorder %v49, 1
    %v97 = vsel %vm96, %v94, %v95
    %v98 = vsel %vm96, %v95, %v94
    %v99 = vsel %vm65, 0.0, %v98
    %v100 = vsel %vm66, 0.0, %v97
    %v101 = vadd.f32 %v85, %v99
    %v102 = vadd.f32 %v86, %v100
    %v103 = vadd.f32 %v101, %v92
    %v104 = vadd.f32 %v102, %v93
    %v105 = vmul.f32 %v103, 0.11111111
    %v106 = vmul.f32 %v104, 0.11111111
    %107 = vrot.lane.b32.xlu0 %v46, 127
    %v108 = vpop.permute.xlu0 %107
    %109 = vrot.lane.b32.xlu0 %v47, 127
    %v110 = vpop.permute.xlu0 %109
    %v111 = vsel %vm70, 0.0, %v108
    %v112 = vsel %vm70, 0.0, %v110
    %113 = vrot.lane.b32.xlu0 %v46, 1
    %v114 = vpop.permute.xlu0 %113
    %115 = vrot.lane.b32.xlu0 %v47, 1
    %v116 = vpop.permute.xlu0 %115
    %v117 = vsel %vm69, 0.0, %v114
    %v118 = vsel %vm69, 0.0, %v116
    %v119 = vadd.f32 %v46, %v117
    %v120 = vadd.f32 %v47, %v118
    %v121 = vadd.f32 %v119, %v111
    %v122 = vadd.f32 %v120, %v112
    %v123 = vrot.slane %v121, 1
    %v124 = vrot.slane %v122, 1
    %v125 = vsel %vm89, %v123, %v124
    %v126 = vsel %vm89, %v124, %v123
    %v127 = vsel %vm67, 0.0, %v125
    %v128 = vsel %vm68, 0.0, %v126
    %v129 = vrot.slane %v121, 7
    %v130 = vrot.slane %v122, 7
    %v131 = vsel %vm96, %v129, %v130
    %v132 = vsel %vm96, %v130, %v129
    %v133 = vsel %vm65, 0.0, %v132
    %v134 = vsel %vm66, 0.0, %v131
    %v135 = vadd.f32 %v121, %v133
    %v136 = vadd.f32 %v122, %v134
    %v137 = vadd.f32 %v135, %v127
    %v138 = vadd.f32 %v136, %v128
    %v139 = vmul.f32 %v137, 0.11111111
    %v140 = vmul.f32 %v138, 0.11111111
    %v141 = vmul.f32 %v105, %v105
    %v142 = vmul.f32 %v106, %v106
    %v143 = vmul.f32 %v139, %v139
    %v144 = vmul.f32 %v140, %v140
    %v145 = vmul.f32 %v105, %v139
    %v146 = vmul.f32 %v106, %v140
    %v147 = vmul.f32 %v44, %v46
    %v148 = vmul.f32 %v45, %v47
    %149 = vrot.lane.b32.xlu0 %v147, 127
    %v150 = vpop.permute.xlu0 %149
    %151 = vrot.lane.b32.xlu0 %v148, 127
    %v152 = vpop.permute.xlu0 %151
    %v153 = vsel %vm70, 0.0, %v150
    %v154 = vsel %vm70, 0.0, %v152
    %155 = vrot.lane.b32.xlu0 %v147, 1
    %v156 = vpop.permute.xlu0 %155
    %157 = vrot.lane.b32.xlu0 %v148, 1
    %v158 = vpop.permute.xlu0 %157
    %v159 = vsel %vm69, 0.0, %v156
    %v160 = vsel %vm69, 0.0, %v158
    %v161 = vadd.f32 %v147, %v159
    %v162 = vadd.f32 %v148, %v160
    %v163 = vadd.f32 %v161, %v153
    %v164 = vadd.f32 %v162, %v154
    %v165 = vrot.slane %v163, 1
    %v166 = vrot.slane %v164, 1
    %v167 = vsel %vm89, %v165, %v166
    %v168 = vsel %vm89, %v166, %v165
    %v169 = vsel %vm67, 0.0, %v167
    %v170 = vsel %vm68, 0.0, %v168
    %v171 = vrot.slane %v163, 7
    %v172 = vrot.slane %v164, 7
    %v173 = vsel %vm96, %v171, %v172
    %v174 = vsel %vm96, %v172, %v171
    %v175 = vsel %vm65, 0.0, %v174
    %v176 = vsel %vm66, 0.0, %v173
    %v177 = vadd.f32 %v163, %v175
    %v178 = vadd.f32 %v164, %v176
    %v179 = vadd.f32 %v177, %v169
    %v180 = vadd.f32 %v178, %v170
    %v181 = vmul.f32 %v179, 0.11111111
    %v182 = vmul.f32 %v180, 0.11111111
    %v183 = vsub.f32 %v181, %v145
    %v184 = vsub.f32 %v182, %v146
    %v185 = vmul.f32 %v145, 2.0
    %v186 = vmul.f32 %v146, 2.0
    %v187 = vadd.f32 %v185, 0.0001
    %v188 = vadd.f32 %v186, 0.0001
    %v189 = vmul.f32 %v183, 2.0
    %v190 = vmul.f32 %v184, 2.0
    %v191 = vadd.f32 %v189, 0.0009
    %v192 = vadd.f32 %v190, 0.0009
    %v193 = vmul.f32 %v187, %v191
    %v194 = vmul.f32 %v188, %v192
    %v195 = vmul.f32 %v44, %v44
    %v196 = vmul.f32 %v45, %v45
    %197 = vrot.lane.b32.xlu0 %v195, 127
    %v198 = vpop.permute.xlu0 %197
    %199 = vrot.lane.b32.xlu0 %v196, 127
    %v200 = vpop.permute.xlu0 %199
    %v201 = vsel %vm70, 0.0, %v198
    %v202 = vsel %vm70, 0.0, %v200
    %203 = vrot.lane.b32.xlu0 %v195, 1
    %v204 = vpop.permute.xlu0 %203
    %205 = vrot.lane.b32.xlu0 %v196, 1
    %v206 = vpop.permute.xlu0 %205
    %v207 = vsel %vm69, 0.0, %v204
    %v208 = vsel %vm69, 0.0, %v206
    %v209 = vadd.f32 %v195, %v207
    %v210 = vadd.f32 %v196, %v208
    %v211 = vadd.f32 %v209, %v201
    %v212 = vadd.f32 %v210, %v202
    %v213 = vrot.slane %v211, 1
    %v214 = vrot.slane %v212, 1
    %v215 = vsel %vm89, %v213, %v214
    %v216 = vsel %vm89, %v214, %v213
    %v217 = vsel %vm67, 0.0, %v215
    %v218 = vsel %vm68, 0.0, %v216
    %v219 = vrot.slane %v211, 7
    %v220 = vrot.slane %v212, 7
    %v221 = vsel %vm96, %v219, %v220
    %v222 = vsel %vm96, %v220, %v219
    %v223 = vsel %vm65, 0.0, %v222
    %v224 = vsel %vm66, 0.0, %v221
    %v225 = vadd.f32 %v211, %v223
    %v226 = vadd.f32 %v212, %v224
    %v227 = vadd.f32 %v225, %v217
    %v228 = vadd.f32 %v226, %v218
    %v229 = vmul.f32 %v227, 0.11111111
    %v230 = vmul.f32 %v228, 0.11111111
    %v231 = vsub.f32 %v229, %v141
    %v232 = vsub.f32 %v230, %v142
    %v233 = vmul.f32 %v46, %v46
    %v234 = vmul.f32 %v47, %v47
    %235 = vrot.lane.b32.xlu0 %v233, 127
    %v236 = vpop.permute.xlu0 %235
    %237 = vrot.lane.b32.xlu0 %v234, 127
    %v238 = vpop.permute.xlu0 %237
    %v239 = vsel %vm70, 0.0, %v236
    %v240 = vsel %vm70, 0.0, %v238
    %241 = vrot.lane.b32.xlu0 %v233, 1
    %v242 = vpop.permute.xlu0 %241
    %243 = vrot.lane.b32.xlu0 %v234, 1
    %v244 = vpop.permute.xlu0 %243
    %v245 = vsel %vm69, 0.0, %v242
    %v246 = vsel %vm69, 0.0, %v244
    %v247 = vadd.f32 %v233, %v245
    %v248 = vadd.f32 %v234, %v246
    %v249 = vadd.f32 %v247, %v239
    %v250 = vadd.f32 %v248, %v240
    %v251 = vrot.slane %v249, 1
    %v252 = vrot.slane %v250, 1
    %v253 = vsel %vm89, %v251, %v252
    %v254 = vsel %vm89, %v252, %v251
    %v255 = vsel %vm67, 0.0, %v253
    %v256 = vsel %vm68, 0.0, %v254
    %v257 = vrot.slane %v249, 7
    %v258 = vrot.slane %v250, 7
    %v259 = vsel %vm96, %v257, %v258
    %v260 = vsel %vm96, %v258, %v257
    %v261 = vsel %vm65, 0.0, %v260
    %v262 = vsel %vm66, 0.0, %v259
    %v263 = vadd.f32 %v249, %v261
    %v264 = vadd.f32 %v250, %v262
    %v265 = vadd.f32 %v263, %v255
    %v266 = vadd.f32 %v264, %v256
    %v267 = vmul.f32 %v265, 0.11111111
    %v268 = vmul.f32 %v266, 0.11111111
    %v269 = vsub.f32 %v267, %v143
    %v270 = vsub.f32 %v268, %v144
    %v271 = vadd.f32 %v231, %v269
    %v272 = vadd.f32 %v232, %v270
    %v273 = vadd.f32 %v141, %v143
    %v274 = vadd.f32 %v142, %v144
    %v275 = vadd.f32 %v273, 0.0001
    %v276 = vadd.f32 %v274, 0.0001
    %v277 = vadd.f32 %v271, 0.0009
    %v278 = vadd.f32 %v272, 0.0009
    %v279 = vmul.f32 %v275, %v277
    %v280 = vmul.f32 %v276, %v278
    %v281 = vrcp.pop %v279
    %v282 = vmul.f32 %v279, %v281
    %v283 = vsub.f32 1.0, %v282
    %v284 = vmul.f32 %v281, %v283
    %v285 = vadd.f32 %v281, %v284
    %vm286 = vweird.f32 %v279
    %vm287 = vweird.f32 %v281
    %vm288 = vmor %vm286, %vm287
    %v289 = vsel %vm288, %v281, %v285
    %v290 = vand.u32 2147483647, %v279
    %vm291 = vcmp.eq.f32.partialorder %v290, 8.507059e+37
    %v292 = vand.u32 %v279, 2147483648
    %v293 = vor.u32 1.1754944e-38, %v292
    %v294 = vsel %vm291, %v293, %v289
    %v295 = vrcp.pop %v280
    %v296 = vmul.f32 %v280, %v295
    %v297 = vsub.f32 1.0, %v296
    %v298 = vmul.f32 %v295, %v297
    %v299 = vadd.f32 %v295, %v298
    %vm300 = vweird.f32 %v280
    %vm301 = vweird.f32 %v295
    %vm302 = vmor %vm300, %vm301
    %v303 = vsel %vm302, %v295, %v299
    %v304 = vand.u32 2147483647, %v280
    %vm305 = vcmp.eq.f32.partialorder %v304, 8.507059e+37
    %v306 = vand.u32 %v280, 2147483648
    %v307 = vor.u32 1.1754944e-38, %v306
    %v308 = vsel %vm305, %v307, %v303
    %v309 = vmul.f32 %v193, %v294
    %v310 = vmul.f32 %v194, %v308
    %v311 = vadd.f32 %v309, %v310
    %v312 = vrot.slane %v311, 4
    %v313 = vadd.f32 %v311, %v312
    %v314 = vrot.slane %v313, 2
    %v315 = vadd.f32 %v313, %v314
    %v316 = vrot.slane %v315, 1
    %v317 = vadd.f32 %v315, %v316
    %318 = vst [vmem:[#allocation7] sm:$0x1] %v317
    // Predicated region
    $region18: #{tpu_custom_call.1} parent=1 // pred_check
      _
    $region19: #{tpu_custom_call.1} parent=1 // pred_check_branch
      %320 = sbr.rel (0) target = $region21
    $region20: #{tpu_custom_call.1} parent=1 // pred_region
      %322 = vsyncadd [#allocation4], 0
      %s324 = sshll.u32 [#allocation7], 4
      %s325 = int_to_ptr.vmem [resolvable:$true] %s324
      %s326 = sshll.u32 %s2, 4
      %s327 = int_to_ptr.hbm [resolvable:$true] %s326
      %329 = dma.vmem_to_hbm [thread:$0]  %s325, 16, %s327, [#allocation4]
    $region21: #{tpu_custom_call.1} parent=1 // pred_fallthru
      _
    // Predicated region
    $region22: #{tpu_custom_call.1} parent=1 // pred_check
      _
    $region23: #{tpu_custom_call.1} parent=1 // pred_check_branch
      %331 = sbr.rel (0) target = $region25
    $region24: #{tpu_custom_call.1} parent=1 // pred_region
      %333 = dma.done [#allocation4], 16
    $region25: #{tpu_custom_call.1} parent=1 // pred_fallthru
      _
    %334 = vsyncpa [#allocation3], 1
    %335 = vsyncpa [#allocation6], 1
    %336 = vsyncpa [#allocation4], 1

</llo_original>
